<compile_context>
chip_gen: v5e
topology: v5e:2x2
jax: 0.10.0
libtpu: 0.0.40
codegen_flags: <defaults>
</compile_context>

<pallas_src>
import functools

import numpy as np
import jax
import jax.numpy as jnp
from jax import lax
from jax.experimental import pallas as pl
from jax.experimental.pallas import tpu as pltpu


def _round_up(x, m):
    return ((x + m - 1) // m) * m


def _round_down(x, m):
    return (x // m) * m


# -----------------------------------------------------------------------------
# Kernels
# -----------------------------------------------------------------------------
def _ln_channels_last_kernel(x_ref, w_ref, b_ref, o_ref, *, eps):
    # x_ref: (bm, C)   w_ref/b_ref: (1, C)   o_ref: (bm, C)
    x = x_ref[...].astype(jnp.float32)
    u = jnp.mean(x, axis=-1, keepdims=True)
    xc = x - u
    var = jnp.mean(xc * xc, axis=-1, keepdims=True)
    inv = lax.rsqrt(var + eps)
    y = xc * inv * w_ref[...].astype(jnp.float32) + b_ref[...].astype(jnp.float32)
    o_ref[...] = y.astype(o_ref.dtype)


def _ln_channels_first_kernel(x_ref, w_ref, b_ref, o_ref, *, eps):
    # x_ref: (1, C, bs)   w_ref/b_ref: (1, C, 1)   o_ref: (1, C, bs)
    x = x_ref[...].astype(jnp.float32)
    u = jnp.mean(x, axis=1, keepdims=True)          # reduce channel (sublane) axis
    xc = x - u
    var = jnp.mean(xc * xc, axis=1, keepdims=True)
    inv = lax.rsqrt(var + eps)
    y = xc * inv * w_ref[...].astype(jnp.float32) + b_ref[...].astype(jnp.float32)
    o_ref[...] = y.astype(o_ref.dtype)


# -----------------------------------------------------------------------------
# Wrappers
# -----------------------------------------------------------------------------
_TARGET_BLOCK_BYTES = 1 << 20  # ~1 MiB per tile; x2 buffers x (in+out) ~ 4 MiB live


def _layer_norm_channels_last(x, weight, bias, eps):
    C = x.shape[-1]
    lead = x.shape[:-1]
    R = int(np.prod(lead)) if lead else 1
    x2 = x.reshape(R, C)

    itemsize = jnp.dtype(x.dtype).itemsize
    bm_target = _round_down(max(_TARGET_BLOCK_BYTES // (C * itemsize), 8), 8)
    bm_target = int(min(max(bm_target, 8), 1024))
    # Full extent if it fits (always legal); otherwise a multiple-of-8 row tile,
    # ragged last block handled by Pallas.
    bm = R if R <= bm_target else bm_target

    out = pl.pallas_call(
        functools.partial(_ln_channels_last_kernel, eps=eps),
        out_shape=jax.ShapeDtypeStruct((R, C), x.dtype),
        grid=(pl.cdiv(R, bm),),
        in_specs=[
            pl.BlockSpec((bm, C), lambda i: (i, 0)),
            pl.BlockSpec((1, C), lambda i: (0, 0)),   # resident weight
            pl.BlockSpec((1, C), lambda i: (0, 0)),   # resident bias
        ],
        out_specs=pl.BlockSpec((bm, C), lambda i: (i, 0)),
        compiler_params=pltpu.CompilerParams(dimension_semantics=("parallel",)),
    )(x2, weight.reshape(1, C), bias.reshape(1, C))

    return out.reshape(x.shape)


def _layer_norm_channels_first(x, weight, bias, eps):
    N, C = x.shape[0], x.shape[1]
    spatial = x.shape[2:]
    S = int(np.prod(spatial)) if spatial else 1
    x3 = x.reshape(N, C, S)

    itemsize = jnp.dtype(x.dtype).itemsize
    bs_target = _round_down(max(_TARGET_BLOCK_BYTES // (C * itemsize), 128), 128)
    bs_target = int(min(max(bs_target, 128), 2048))
    # Full spatial extent if small (always legal); otherwise a 128-multiple lane
    # tile with the ragged last block handled by Pallas.
    bs = S if S <= bs_target else bs_target

    out = pl.pallas_call(
        functools.partial(_ln_channels_first_kernel, eps=eps),
        out_shape=jax.ShapeDtypeStruct((N, C, S), x.dtype),
        grid=(N, pl.cdiv(S, bs)),
        in_specs=[
            pl.BlockSpec((1, C, bs), lambda n, s: (n, 0, s)),
            pl.BlockSpec((1, C, 1), lambda n, s: (0, 0, 0)),   # resident weight
            pl.BlockSpec((1, C, 1), lambda n, s: (0, 0, 0)),   # resident bias
        ],
        out_specs=pl.BlockSpec((1, C, bs), lambda n, s: (n, 0, s)),
        compiler_params=pltpu.CompilerParams(
            dimension_semantics=("parallel", "parallel")),
    )(x3, weight.reshape(1, C, 1), bias.reshape(1, C, 1))

    return out.reshape(x.shape)


def layer_norm_forward(x, weight, bias, eps=1e-6, data_format="channels_last"):
    """Matches LayerNorm.forward from _dover.py.

    channels_last : x (..., C), normalize over the last dim.
    channels_first: x (N, C, H, W) or (N, C, T, H, W), normalize over dim 1.
    weight, bias  : shape (C,).
    """
    if data_format == "channels_last":
        return _layer_norm_channels_last(x, weight, bias, eps)
    elif data_format == "channels_first":
        return _layer_norm_channels_first(x, weight, bias, eps)
    raise NotImplementedError(data_format)


# -----------------------------------------------------------------------------
# Pure-JAX reference
# -----------------------------------------------------------------------------
def _reference(x, weight, bias, eps, data_format):
    if data_format == "channels_last":
        u = jnp.mean(x, axis=-1, keepdims=True)
        s = jnp.mean((x - u) ** 2, axis=-1, keepdims=True)
        return (x - u) / jnp.sqrt(s + eps) * weight + bias
    u = jnp.mean(x, axis=1, keepdims=True)
    s = jnp.mean((x - u) ** 2, axis=1, keepdims=True)
    y = (x - u) / jnp.sqrt(s + eps)
    bshape = (1, -1) + (1,) * (x.ndim - 2)
    return y * weight.reshape(bshape) + bias.reshape(bshape)


if __name__ == "__main__":
    key = jax.random.PRNGKey(0)
    k1, k2, k3, kw, kb = jax.random.split(key, 5)

    C = 32
    eps = 1e-6
    weight = 1.0 + 0.1 * jax.random.normal(kw, (C,), dtype=jnp.float32)
    bias = 0.05 * jax.random.normal(kb, (C,), dtype=jnp.float32)

    # channels_last: (B, H, W, C)
    x_last = jax.random.normal(k1, (2, 8, 8, C), dtype=jnp.float32)
    # channels_first 4D: (B, C, H, W)
    x_first4 = jax.random.normal(k2, (2, C, 8, 8), dtype=jnp.float32)
    # channels_first 5D: (B, C, T, H, W)
    x_first5 = jax.random.normal(k3, (2, C, 2, 4, 4), dtype=jnp.float32)

    cases = [
        (x_last, "channels_last"),
        (x_first4, "channels_first"),
        (x_first5, "channels_first"),
    ]
    for x, fmt in cases:
        out = layer_norm_forward(x, weight, bias, eps=eps, data_format=fmt)
        jax.block_until_ready(out)
        ref = _reference(x, weight, bias, eps, fmt)
        assert out.shape == x.shape, (out.shape, x.shape)
        assert jnp.allclose(out, ref, atol=1e-5, rtol=1e-5), f"mismatch ({fmt})"

    print("KERNEL_OK")
</pallas_src>

<mosaic_0001>
module attributes {stable_mosaic.version = 11 : i64} {
  func.func @_ln_channels_last_kernel(%arg0: i32, %arg1: memref<128x32xf32, #tpu.memory_space<vmem>>, %arg2: memref<1x32xf32, #tpu.memory_space<vmem>>, %arg3: memref<1x32xf32, #tpu.memory_space<vmem>>, %arg4: memref<128x32xf32, #tpu.memory_space<vmem>>) attributes {dimension_semantics = [#tpu.dimension_semantics<parallel>], iteration_bounds = array<i64: 1>, scalar_prefetch = 0 : i64, scratch_operands = 0 : i64, tpu.core_type = #tpu.core_type<tc>, window_params = [{transform_indices = @transform_0, window_bounds = array<i64: 128, 32>}, {pipeline_mode = #tpu.pipeline_mode<synchronous>, transform_indices = @transform_1, window_bounds = array<i64: 1, 32>}, {pipeline_mode = #tpu.pipeline_mode<synchronous>, transform_indices = @transform_2, window_bounds = array<i64: 1, 32>}, {transform_indices = @transform_3, window_bounds = array<i64: 128, 32>}]} {
    %c0 = arith.constant 0 : index
    %c0_0 = arith.constant 0 : index
    %0 = vector.load %arg1[%c0, %c0_0] : memref<128x32xf32, #tpu.memory_space<vmem>>, vector<128x32xf32>
    %cst = arith.constant dense<0.000000e+00> : vector<128xf32>
    %1 = vector.multi_reduction <add>, %0, %cst [1] : vector<128x32xf32> to vector<128xf32>
    %2 = vector.shape_cast %1 : vector<128xf32> to vector<128x1xf32>
    %cst_1 = arith.constant 3.200000e+01 : f32
    %3 = vector.broadcast %cst_1 : f32 to vector<128x1xf32>
    %4 = arith.divf %2, %3 : vector<128x1xf32>
    %5 = vector.broadcast %4 : vector<128x1xf32> to vector<128x32xf32>
    %6 = arith.subf %0, %5 : vector<128x32xf32>
    %7 = arith.mulf %6, %6 : vector<128x32xf32>
    %cst_2 = arith.constant dense<0.000000e+00> : vector<128xf32>
    %8 = vector.multi_reduction <add>, %7, %cst_2 [1] : vector<128x32xf32> to vector<128xf32>
    %9 = vector.shape_cast %8 : vector<128xf32> to vector<128x1xf32>
    %cst_3 = arith.constant 3.200000e+01 : f32
    %10 = vector.broadcast %cst_3 : f32 to vector<128x1xf32>
    %11 = arith.divf %9, %10 : vector<128x1xf32>
    %cst_4 = arith.constant 9.99999997E-7 : f32
    %12 = vector.broadcast %cst_4 : f32 to vector<128x1xf32>
    %13 = arith.addf %11, %12 : vector<128x1xf32>
    %14 = math.rsqrt %13 : vector<128x1xf32>
    %15 = vector.broadcast %14 : vector<128x1xf32> to vector<128x32xf32>
    %16 = arith.mulf %6, %15 : vector<128x32xf32>
    %c0_5 = arith.constant 0 : index
    %c0_6 = arith.constant 0 : index
    %17 = vector.load %arg2[%c0_5, %c0_6] : memref<1x32xf32, #tpu.memory_space<vmem>>, vector<1x32xf32>
    %18 = vector.broadcast %17 : vector<1x32xf32> to vector<128x32xf32>
    %19 = arith.mulf %16, %18 : vector<128x32xf32>
    %c0_7 = arith.constant 0 : index
    %c0_8 = arith.constant 0 : index
    %20 = vector.load %arg3[%c0_7, %c0_8] : memref<1x32xf32, #tpu.memory_space<vmem>>, vector<1x32xf32>
    %21 = vector.broadcast %20 : vector<1x32xf32> to vector<128x32xf32>
    %22 = arith.addf %19, %21 : vector<128x32xf32>
    %c0_9 = arith.constant 0 : index
    %c0_10 = arith.constant 0 : index
    %23 = vector.load %arg4[%c0_9, %c0_10] : memref<128x32xf32, #tpu.memory_space<vmem>>, vector<128x32xf32>
    tpu.vector_store %arg4[%c0_9, %c0_10], %22 {strides = array<i32>} : memref<128x32xf32, #tpu.memory_space<vmem>>, vector<128x32xf32>,
    return
  }
  func.func @transform_0(%arg0: i32) -> (i32, i32) {
    %c0_i32 = arith.constant 0 : i32
    %c0_i32_0 = arith.constant 0 : i32
    return %arg0, %c0_i32 : i32, i32
  }
  func.func @transform_1(%arg0: i32) -> (i32, i32) {
    %c0_i32 = arith.constant 0 : i32
    %c0_i32_0 = arith.constant 0 : i32
    %c0_i32_1 = arith.constant 0 : i32
    return %c0_i32, %c0_i32_0 : i32, i32
  }
  func.func @transform_2(%arg0: i32) -> (i32, i32) {
    %c0_i32 = arith.constant 0 : i32
    %c0_i32_0 = arith.constant 0 : i32
    %c0_i32_1 = arith.constant 0 : i32
    return %c0_i32, %c0_i32_0 : i32, i32
  }
  func.func @transform_3(%arg0: i32) -> (i32, i32) {
    %c0_i32 = arith.constant 0 : i32
    %c0_i32_0 = arith.constant 0 : i32
    return %arg0, %c0_i32 : i32, i32
  }
}

</mosaic_0001>

<llo_original>
// kernel: tpu_custom_call.1
$region0: #{tpu_custom_call.1}
  #allocation0 [shape = 'u32[]', space=smem, size = 0x4, offset = 0x4, fixed_abs, tag = 'smem constant byte address 0x4 - core index']
  #allocation1 [shape = 'u32[72,128]{1,0:T(1,128)}', space=vmem, size = 0x9000, scoped, tag = 'internal scratch']
  %s0 = inlined_call_operand.vmem [shape: f32[128,32], index: 0, kind: input, shape index: {}]
  %s1 = inlined_call_operand.vmem [shape: f32[1,32], index: 1, kind: input, shape index: {}]
  %s2 = inlined_call_operand.vmem [shape: f32[1,32], index: 2, kind: input, shape index: {}]
  %s3 = inlined_call_operand.vmem [shape: f32[128,32], index: 3, kind: output, shape index: {}]
  %s4 = sld [smem:[#allocation0]]
  $region22: #{tpu_custom_call.1} parent=0
    _
  %s6 = ssub.s32 1, %s4
  %s7 = scalar_select 0, %s6, %s4
  // Predicated region
  $region2: #{tpu_custom_call.1} parent=0 // pred_check
    _
  $region3: #{tpu_custom_call.1} parent=0 // pred_check_branch
    %9 = sbr.rel (0) target = $region5
  $region4: #{tpu_custom_call.1} parent=0 // pred_region
    _
  $region5: #{tpu_custom_call.1} parent=0 // pred_fallthru
    _
  // Predicated region
  $region6: #{tpu_custom_call.1} parent=0 // pred_check
    _
  $region7: #{tpu_custom_call.1} parent=0 // pred_check_branch
    %11 = sbr.rel (0) target = $region9
  $region8: #{tpu_custom_call.1} parent=0 // pred_region
    _
  $region9: #{tpu_custom_call.1} parent=0 // pred_fallthru
    _
  // Predicated region
  $region10: #{tpu_custom_call.1} parent=0 // pred_check
    _
  $region11: #{tpu_custom_call.1} parent=0 // pred_check_branch
    %13 = sbr.rel (0) target = $region13
  $region12: #{tpu_custom_call.1} parent=0 // pred_region
    _
  $region13: #{tpu_custom_call.1} parent=0 // pred_fallthru
    _
  %v14 = vld [vmem:[%s0] sm:$0xff]
  %v15 = vld [vmem:[%s0 + $0x8] sm:$0xff]
  %v16 = vld [vmem:[%s0 + $0x10] sm:$0xff]
  %v17 = vld [vmem:[%s0 + $0x18] sm:$0xff]
  %v18 = vld [vmem:[%s0 + $0x20] sm:$0xff]
  %v19 = vld [vmem:[%s0 + $0x28] sm:$0xff]
  %v20 = vld [vmem:[%s0 + $0x30] sm:$0xff]
  %v21 = vld [vmem:[%s0 + $0x38] sm:$0xff]
  %v22 = vld [vmem:[%s0 + $0x40] sm:$0xff]
  %v23 = vld [vmem:[%s0 + $0x48] sm:$0xff]
  %v24 = vld [vmem:[%s0 + $0x50] sm:$0xff]
  %v25 = vld [vmem:[%s0 + $0x58] sm:$0xff]
  %v26 = vld [vmem:[%s0 + $0x60] sm:$0xff]
  %v27 = vld [vmem:[%s0 + $0x68] sm:$0xff]
  %v28 = vld [vmem:[%s0 + $0x70] sm:$0xff]
  %v29 = vld [vmem:[%s0 + $0x78] sm:$0xff]
  %vm30 = vcmask 261120
  %v31 = vsel %vm30, %v14, 0.0
  %32 = vadd.xlane.f32.xlu0 %v31
  %v33 = vpop.xlane.xlu0 %32
  %v34 = vsel %vm30, %v15, 0.0
  %35 = vadd.xlane.f32.xlu0 %v34
  %v36 = vpop.xlane.xlu0 %35
  %v37 = vsel %vm30, %v16, 0.0
  %38 = vadd.xlane.f32.xlu0 %v37
  %v39 = vpop.xlane.xlu0 %38
  %v40 = vsel %vm30, %v17, 0.0
  %41 = vadd.xlane.f32.xlu0 %v40
  %v42 = vpop.xlane.xlu0 %41
  %v43 = vsel %vm30, %v18, 0.0
  %44 = vadd.xlane.f32.xlu0 %v43
  %v45 = vpop.xlane.xlu0 %44
  %v46 = vsel %vm30, %v19, 0.0
  %47 = vadd.xlane.f32.xlu0 %v46
  %v48 = vpop.xlane.xlu0 %47
  %v49 = vsel %vm30, %v20, 0.0
  %50 = vadd.xlane.f32.xlu0 %v49
  %v51 = vpop.xlane.xlu0 %50
  %v52 = vsel %vm30, %v21, 0.0
  %53 = vadd.xlane.f32.xlu0 %v52
  %v54 = vpop.xlane.xlu0 %53
  %v55 = vsel %vm30, %v22, 0.0
  %56 = vadd.xlane.f32.xlu0 %v55
  %v57 = vpop.xlane.xlu0 %56
  %v58 = vsel %vm30, %v23, 0.0
  %59 = vadd.xlane.f32.xlu0 %v58
  %v60 = vpop.xlane.xlu0 %59
  %v61 = vsel %vm30, %v24, 0.0
  %62 = vadd.xlane.f32.xlu0 %v61
  %v63 = vpop.xlane.xlu0 %62
  %v64 = vsel %vm30, %v25, 0.0
  %65 = vadd.xlane.f32.xlu0 %v64
  %v66 = vpop.xlane.xlu0 %65
  %v67 = vsel %vm30, %v26, 0.0
  %68 = vadd.xlane.f32.xlu0 %v67
  %v69 = vpop.xlane.xlu0 %68
  %v70 = vsel %vm30, %v27, 0.0
  %71 = vadd.xlane.f32.xlu0 %v70
  %v72 = vpop.xlane.xlu0 %71
  %v73 = vsel %vm30, %v28, 0.0
  %74 = vadd.xlane.f32.xlu0 %v73
  %v75 = vpop.xlane.xlu0 %74
  %v76 = vsel %vm30, %v29, 0.0
  %77 = vadd.xlane.f32.xlu0 %v76
  %v78 = vpop.xlane.xlu0 %77
  %v79 = vrcp.pop 32.0
  %v80 = vmul.f32 32.0, %v79
  %v81 = vsub.f32 1.0, %v80
  %v82 = vmul.f32 %v79, %v81
  %v83 = vadd.f32 %v79, %v82
  %vm84 = vweird.f32 %v79
  %v85 = vsel %vm84, %v79, %v83
  %v86 = vmul.f32 %v33, %v85
  %v87 = vmul.f32 %v36, %v85
  %v88 = vmul.f32 %v39, %v85
  %v89 = vmul.f32 %v42, %v85
  %v90 = vmul.f32 %v45, %v85
  %v91 = vmul.f32 %v48, %v85
  %v92 = vmul.f32 %v51, %v85
  %v93 = vmul.f32 %v54, %v85
  %v94 = vmul.f32 %v57, %v85
  %v95 = vmul.f32 %v60, %v85
  %v96 = vmul.f32 %v63, %v85
  %v97 = vmul.f32 %v66, %v85
  %v98 = vmul.f32 %v69, %v85
  %v99 = vmul.f32 %v72, %v85
  %v100 = vmul.f32 %v75, %v85
  %v101 = vmul.f32 %v78, %v85
  %v102 = vsub.f32 %v14, %v86
  %v103 = vsub.f32 %v15, %v87
  %v104 = vsub.f32 %v16, %v88
  %v105 = vsub.f32 %v17, %v89
  %v106 = vsub.f32 %v18, %v90
  %v107 = vsub.f32 %v19, %v91
  %v108 = vsub.f32 %v20, %v92
  %v109 = vsub.f32 %v21, %v93
  %v110 = vsub.f32 %v22, %v94
  %v111 = vsub.f32 %v23, %v95
  %v112 = vsub.f32 %v24, %v96
  %v113 = vsub.f32 %v25, %v97
  %v114 = vsub.f32 %v26, %v98
  %v115 = vsub.f32 %v27, %v99
  %v116 = vsub.f32 %v28, %v100
  %v117 = vsub.f32 %v29, %v101
  %v118 = vmul.f32 %v102, %v102
  %v119 = vmul.f32 %v103, %v103
  %v120 = vmul.f32 %v104, %v104
  %v121 = vmul.f32 %v105, %v105
  %v122 = vmul.f32 %v106, %v106
  %v123 = vmul.f32 %v107, %v107
  %v124 = vmul.f32 %v108, %v108
  %v125 = vmul.f32 %v109, %v109
  %v126 = vmul.f32 %v110, %v110
  %v127 = vmul.f32 %v111, %v111
  %v128 = vmul.f32 %v112, %v112
  %v129 = vmul.f32 %v113, %v113
  %v130 = vmul.f32 %v114, %v114
  %v131 = vmul.f32 %v115, %v115
  %v132 = vmul.f32 %v116, %v116
  %v133 = vmul.f32 %v117, %v117
  %v134 = vsel %vm30, %v118, 0.0
  %135 = vadd.xlane.f32.xlu0 %v134
  %v136 = vpop.xlane.xlu0 %135
  %v137 = vsel %vm30, %v119, 0.0
  %138 = vadd.xlane.f32.xlu0 %v137
  %v139 = vpop.xlane.xlu0 %138
  %v140 = vsel %vm30, %v120, 0.0
  %141 = vadd.xlane.f32.xlu0 %v140
  %v142 = vpop.xlane.xlu0 %141
  %v143 = vsel %vm30, %v121, 0.0
  %144 = vadd.xlane.f32.xlu0 %v143
  %v145 = vpop.xlane.xlu0 %144
  %v146 = vsel %vm30, %v122, 0.0
  %147 = vadd.xlane.f32.xlu0 %v146
  %v148 = vpop.xlane.xlu0 %147
  %v149 = vsel %vm30, %v123, 0.0
  %150 = vadd.xlane.f32.xlu0 %v149
  %v151 = vpop.xlane.xlu0 %150
  %v152 = vsel %vm30, %v124, 0.0
  %153 = vadd.xlane.f32.xlu0 %v152
  %v154 = vpop.xlane.xlu0 %153
  %v155 = vsel %vm30, %v125, 0.0
  %156 = vadd.xlane.f32.xlu0 %v155
  %v157 = vpop.xlane.xlu0 %156
  %v158 = vsel %vm30, %v126, 0.0
  %159 = vadd.xlane.f32.xlu0 %v158
  %v160 = vpop.xlane.xlu0 %159
  %v161 = vsel %vm30, %v127, 0.0
  %162 = vadd.xlane.f32.xlu0 %v161
  %v163 = vpop.xlane.xlu0 %162
  %v164 = vsel %vm30, %v128, 0.0
  %165 = vadd.xlane.f32.xlu0 %v164
  %v166 = vpop.xlane.xlu0 %165
  %v167 = vsel %vm30, %v129, 0.0
  %168 = vadd.xlane.f32.xlu0 %v167
  %v169 = vpop.xlane.xlu0 %168
  %v170 = vsel %vm30, %v130, 0.0
  %171 = vadd.xlane.f32.xlu0 %v170
  %v172 = vpop.xlane.xlu0 %171
  %v173 = vsel %vm30, %v131, 0.0
  %174 = vadd.xlane.f32.xlu0 %v173
  %v175 = vpop.xlane.xlu0 %174
  %v176 = vsel %vm30, %v132, 0.0
  %177 = vadd.xlane.f32.xlu0 %v176
  %v178 = vpop.xlane.xlu0 %177
  %v179 = vsel %vm30, %v133, 0.0
  %180 = vadd.xlane.f32.xlu0 %v179
  %v181 = vpop.xlane.xlu0 %180
  %v182 = vmul.f32 %v136, %v85
  %v183 = vmul.f32 %v139, %v85
  %v184 = vmul.f32 %v142, %v85
  %v185 = vmul.f32 %v145, %v85
  %v186 = vmul.f32 %v148, %v85
  %v187 = vmul.f32 %v151, %v85
  %v188 = vmul.f32 %v154, %v85
  %v189 = vmul.f32 %v157, %v85
  %v190 = vmul.f32 %v160, %v85
  %v191 = vmul.f32 %v163, %v85
  %v192 = vmul.f32 %v166, %v85
  %v193 = vmul.f32 %v169, %v85
  %v194 = vmul.f32 %v172, %v85
  %v195 = vmul.f32 %v175, %v85
  %v196 = vmul.f32 %v178, %v85
  %v197 = vmul.f32 %v181, %v85
  %v198 = vadd.f32 %v182, 1e-06
  %v199 = vadd.f32 %v183, 1e-06
  %v200 = vadd.f32 %v184, 1e-06
  %v201 = vadd.f32 %v185, 1e-06
  %v202 = vadd.f32 %v186, 1e-06
  %v203 = vadd.f32 %v187, 1e-06
  %v204 = vadd.f32 %v188, 1e-06
  %v205 = vadd.f32 %v189, 1e-06
  %v206 = vadd.f32 %v190, 1e-06
  %v207 = vadd.f32 %v191, 1e-06
  %v208 = vadd.f32 %v192, 1e-06
  %v209 = vadd.f32 %v193, 1e-06
  %v210 = vadd.f32 %v194, 1e-06
  %v211 = vadd.f32 %v195, 1e-06
  %v212 = vadd.f32 %v196, 1e-06
  %v213 = vadd.f32 %v197, 1e-06
  %v214 = vrsqrt.pop %v198
  %v215 = vmul.f32 %v214, %v198
  %v216 = vmul.f32 %v215, %v214
  %v217 = vmul.f32 0.5, %v216
  %v218 = vsub.f32 1.5, %v217
  %v219 = vmul.f32 %v214, %v218
  %vm220 = vweird.f32 %v198
  %vm221 = vweird.f32 %v214
  %vm222 = vmor %vm220, %vm221
  %v223 = vsel %vm222, %v214, %v219
  %v224 = vrsqrt.pop %v199
  %v225 = vmul.f32 %v224, %v199
  %v226 = vmul.f32 %v225, %v224
  %v227 = vmul.f32 0.5, %v226
  %v228 = vsub.f32 1.5, %v227
  %v229 = vmul.f32 %v224, %v228
  %vm230 = vweird.f32 %v199
  %vm231 = vweird.f32 %v224
  %vm232 = vmor %vm230, %vm231
  %v233 = vsel %vm232, %v224, %v229
  %v234 = vrsqrt.pop %v200
  %v235 = vmul.f32 %v234, %v200
  %v236 = vmul.f32 %v235, %v234
  %v237 = vmul.f32 0.5, %v236
  %v238 = vsub.f32 1.5, %v237
  %v239 = vmul.f32 %v234, %v238
  %vm240 = vweird.f32 %v200
  %vm241 = vweird.f32 %v234
  %vm242 = vmor %vm240, %vm241
  %v243 = vsel %vm242, %v234, %v239
  %v244 = vrsqrt.pop %v201
  %v245 = vmul.f32 %v244, %v201
  %v246 = vmul.f32 %v245, %v244
  %v247 = vmul.f32 0.5, %v246
  %v248 = vsub.f32 1.5, %v247
  %v249 = vmul.f32 %v244, %v248
  %vm250 = vweird.f32 %v201
  %vm251 = vweird.f32 %v244
  %vm252 = vmor %vm250, %vm251
  %v253 = vsel %vm252, %v244, %v249
  %v254 = vrsqrt.pop %v202
  %v255 = vmul.f32 %v254, %v202
  %v256 = vmul.f32 %v255, %v254
  %v257 = vmul.f32 0.5, %v256
  %v258 = vsub.f32 1.5, %v257
  %v259 = vmul.f32 %v254, %v258
  %vm260 = vweird.f32 %v202
  %vm261 = vweird.f32 %v254
  %vm262 = vmor %vm260, %vm261
  %v263 = vsel %vm262, %v254, %v259
  %v264 = vrsqrt.pop %v203
  %v265 = vmul.f32 %v264, %v203
  %v266 = vmul.f32 %v265, %v264
  %v267 = vmul.f32 0.5, %v266
  %v268 = vsub.f32 1.5, %v267
  %v269 = vmul.f32 %v264, %v268
  %vm270 = vweird.f32 %v203
  %vm271 = vweird.f32 %v264
  %vm272 = vmor %vm270, %vm271
  %v273 = vsel %vm272, %v264, %v269
  %v274 = vrsqrt.pop %v204
  %v275 = vmul.f32 %v274, %v204
  %v276 = vmul.f32 %v275, %v274
  %v277 = vmul.f32 0.5, %v276
  %v278 = vsub.f32 1.5, %v277
  %v279 = vmul.f32 %v274, %v278
  %vm280 = vweird.f32 %v204
  %vm281 = vweird.f32 %v274
  %vm282 = vmor %vm280, %vm281
  %v283 = vsel %vm282, %v274, %v279
  %v284 = vrsqrt.pop %v205
  %v285 = vmul.f32 %v284, %v205
  %v286 = vmul.f32 %v285, %v284
  %v287 = vmul.f32 0.5, %v286
  %v288 = vsub.f32 1.5, %v287
  %v289 = vmul.f32 %v284, %v288
  %vm290 = vweird.f32 %v205
  %vm291 = vweird.f32 %v284
  %vm292 = vmor %vm290, %vm291
  %v293 = vsel %vm292, %v284, %v289
  %v294 = vrsqrt.pop %v206
  %v295 = vmul.f32 %v294, %v206
  %v296 = vmul.f32 %v295, %v294
  %v297 = vmul.f32 0.5, %v296
  %v298 = vsub.f32 1.5, %v297
  %v299 = vmul.f32 %v294, %v298
  %vm300 = vweird.f32 %v206
  %vm301 = vweird.f32 %v294
  %vm302 = vmor %vm300, %vm301
  %v303 = vsel %vm302, %v294, %v299
  %v304 = vrsqrt.pop %v207
  %v305 = vmul.f32 %v304, %v207
  %v306 = vmul.f32 %v305, %v304
  %v307 = vmul.f32 0.5, %v306
  %v308 = vsub.f32 1.5, %v307
  %v309 = vmul.f32 %v304, %v308
  %vm310 = vweird.f32 %v207
  %vm311 = vweird.f32 %v304
  %vm312 = vmor %vm310, %vm311
  %v313 = vsel %vm312, %v304, %v309
  %v314 = vrsqrt.pop %v208
  %v315 = vmul.f32 %v314, %v208
  %v316 = vmul.f32 %v315, %v314
  %v317 = vmul.f32 0.5, %v316
  %v318 = vsub.f32 1.5, %v317
  %v319 = vmul.f32 %v314, %v318
  %vm320 = vweird.f32 %v208
  %vm321 = vweird.f32 %v314
  %vm322 = vmor %vm320, %vm321
  %v323 = vsel %vm322, %v314, %v319
  %v324 = vrsqrt.pop %v209
  %v325 = vmul.f32 %v324, %v209
  %v326 = vmul.f32 %v325, %v324
  %v327 = vmul.f32 0.5, %v326
  %v328 = vsub.f32 1.5, %v327
  %v329 = vmul.f32 %v324, %v328
  %vm330 = vweird.f32 %v209
  %vm331 = vweird.f32 %v324
  %vm332 = vmor %vm330, %vm331
  %v333 = vsel %vm332, %v324, %v329
  %v334 = vrsqrt.pop %v210
  %v335 = vmul.f32 %v334, %v210
  %v336 = vmul.f32 %v335, %v334
  %v337 = vmul.f32 0.5, %v336
  %v338 = vsub.f32 1.5, %v337
  %v339 = vmul.f32 %v334, %v338
  %vm340 = vweird.f32 %v210
  %vm341 = vweird.f32 %v334
  %vm342 = vmor %vm340, %vm341
  %v343 = vsel %vm342, %v334, %v339
  %v344 = vrsqrt.pop %v211
  %v345 = vmul.f32 %v344, %v211
  %v346 = vmul.f32 %v345, %v344
  %v347 = vmul.f32 0.5, %v346
  %v348 = vsub.f32 1.5, %v347
  %v349 = vmul.f32 %v344, %v348
  %vm350 = vweird.f32 %v211
  %vm351 = vweird.f32 %v344
  %vm352 = vmor %vm350, %vm351
  %v353 = vsel %vm352, %v344, %v349
  %v354 = vrsqrt.pop %v212
  %v355 = vmul.f32 %v354, %v212
  %v356 = vmul.f32 %v355, %v354
  %v357 = vmul.f32 0.5, %v356
  %v358 = vsub.f32 1.5, %v357
  %v359 = vmul.f32 %v354, %v358
  %vm360 = vweird.f32 %v212
  %vm361 = vweird.f32 %v354
  %vm362 = vmor %vm360, %vm361
  %v363 = vsel %vm362, %v354, %v359
  %v364 = vrsqrt.pop %v213
  %v365 = vmul.f32 %v364, %v213
  %v366 = vmul.f32 %v365, %v364
  %v367 = vmul.f32 0.5, %v366
  %v368 = vsub.f32 1.5, %v367
  %v369 = vmul.f32 %v364, %v368
  %vm370 = vweird.f32 %v213
  %vm371 = vweird.f32 %v364
  %vm372 = vmor %vm370, %vm371
  %v373 = vsel %vm372, %v364, %v369
  %v374 = vmul.f32 %v102, %v223
  %v375 = vmul.f32 %v103, %v233
  %v376 = vmul.f32 %v104, %v243
  %v377 = vmul.f32 %v105, %v253
  %v378 = vmul.f32 %v106, %v263
  %v379 = vmul.f32 %v107, %v273
  %v380 = vmul.f32 %v108, %v283
  %v381 = vmul.f32 %v109, %v293
  %v382 = vmul.f32 %v110, %v303
  %v383 = vmul.f32 %v111, %v313
  %v384 = vmul.f32 %v112, %v323
  %v385 = vmul.f32 %v113, %v333
  %v386 = vmul.f32 %v114, %v343
  %v387 = vmul.f32 %v115, %v353
  %v388 = vmul.f32 %v116, %v363
  %v389 = vmul.f32 %v117, %v373
  %v390 = vld [vmem:[%s1] sm:$0x1]
  %v392 = vperm.slane %v390, 0
  %v394 = vmul.f32 %v374, %v392
  %v395 = vmul.f32 %v375, %v392
  %v396 = vmul.f32 %v376, %v392
  %v397 = vmul.f32 %v377, %v392
  %v398 = vmul.f32 %v378, %v392
  %v399 = vmul.f32 %v379, %v392
  %v400 = vmul.f32 %v380, %v392
  %v401 = vmul.f32 %v381, %v392
  %v402 = vmul.f32 %v382, %v392
  %v403 = vmul.f32 %v383, %v392
  %v404 = vmul.f32 %v384, %v392
  %v405 = vmul.f32 %v385, %v392
  %v406 = vmul.f32 %v386, %v392
  %v407 = vmul.f32 %v387, %v392
  %v408 = vmul.f32 %v388, %v392
  %v409 = vmul.f32 %v389, %v392
  %v410 = vld [vmem:[%s2] sm:$0x1]
  %v412 = vperm.slane %v410, 0
  %v414 = vadd.f32 %v394, %v412
  %v415 = vadd.f32 %v395, %v412
  %v416 = vadd.f32 %v396, %v412
  %v417 = vadd.f32 %v397, %v412
  %v418 = vadd.f32 %v398, %v412
  %v419 = vadd.f32 %v399, %v412
  %v420 = vadd.f32 %v400, %v412
  %v421 = vadd.f32 %v401, %v412
  %v422 = vadd.f32 %v402, %v412
  %v423 = vadd.f32 %v403, %v412
  %v424 = vadd.f32 %v404, %v412
  %v425 = vadd.f32 %v405, %v412
  %v426 = vadd.f32 %v406, %v412
  %v427 = vadd.f32 %v407, %v412
  %v428 = vadd.f32 %v408, %v412
  %v429 = vadd.f32 %v409, %v412
  %430 = vst.msk [vmem:[%s3] sm:$0xff] %vm30, %v414
  %431 = vst.msk [vmem:[%s3 + $0x8] sm:$0xff] %vm30, %v415
  %432 = vst.msk [vmem:[%s3 + $0x10] sm:$0xff] %vm30, %v416
  %433 = vst.msk [vmem:[%s3 + $0x18] sm:$0xff] %vm30, %v417
  %434 = vst.msk [vmem:[%s3 + $0x20] sm:$0xff] %vm30, %v418
  %435 = vst.msk [vmem:[%s3 + $0x28] sm:$0xff] %vm30, %v419
  %436 = vst.msk [vmem:[%s3 + $0x30] sm:$0xff] %vm30, %v420
  %437 = vst.msk [vmem:[%s3 + $0x38] sm:$0xff] %vm30, %v421
  %438 = vst.msk [vmem:[%s3 + $0x40] sm:$0xff] %vm30, %v422
  %439 = vst.msk [vmem:[%s3 + $0x48] sm:$0xff] %vm30, %v423
  %440 = vst.msk [vmem:[%s3 + $0x50] sm:$0xff] %vm30, %v424
  %441 = vst.msk [vmem:[%s3 + $0x58] sm:$0xff] %vm30, %v425
  %442 = vst.msk [vmem:[%s3 + $0x60] sm:$0xff] %vm30, %v426
  %443 = vst.msk [vmem:[%s3 + $0x68] sm:$0xff] %vm30, %v427
  %444 = vst.msk [vmem:[%s3 + $0x70] sm:$0xff] %vm30, %v428
  %445 = vst.msk [vmem:[%s3 + $0x78] sm:$0xff] %vm30, %v429
  // Predicated region
  $region14: #{tpu_custom_call.1} parent=0 // pred_check
    _
  $region15: #{tpu_custom_call.1} parent=0 // pred_check_branch
    %447 = sbr.rel (0) target = $region17
  $region16: #{tpu_custom_call.1} parent=0 // pred_region
    _
  $region17: #{tpu_custom_call.1} parent=0 // pred_fallthru
    _
  // Predicated region
  $region18: #{tpu_custom_call.1} parent=0 // pred_check
    _
  $region19: #{tpu_custom_call.1} parent=0 // pred_check_branch
    %449 = sbr.rel (0) target = $region21
  $region20: #{tpu_custom_call.1} parent=0 // pred_region
    _
  $region21: #{tpu_custom_call.1} parent=0 // pred_fallthru
    _

</llo_original>
